<compile_context>
chip_gen: v7x
topology: tpu7x:2x2x1
jax: 0.10.0
libtpu: 0.0.40
codegen_flags: <defaults>
</compile_context>

<pallas_src>
import functools
import math

import jax
import jax.numpy as jnp
from jax.experimental import pallas as pl
from jax.experimental.pallas import tpu as pltpu


def _ds_partial_kernel(gt_ref, *rest, num_levels, tile_rows, lanes,
                       total_rows, out_rows, needs_mask):
    """One row-tile: emit per-level partial Dice sums as lane-dense rows.

    Output block layout (row, all `lanes` columns are partial sums):
      rows 0 .. L-1        : per-lane sum(sigmoid(pred_l) * gt)  (intersection)
      rows L .. 2L-1       : per-lane sum(sigmoid(pred_l))
      row  2L              : per-lane sum(gt)
      rows 2L+1 .. out_rows: zero padding
    """
    pred_refs = rest[:num_levels]
    out_ref = rest[num_levels]

    g = gt_ref[...].astype(jnp.float32)
    if needs_mask:
        row0 = pl.program_id(0) * tile_rows
        rowid = row0 + jax.lax.broadcasted_iota(jnp.int32, (tile_rows, lanes), 0)
        valid = rowid < total_rows
        g = jnp.where(valid, g, 0.0)

    inter_rows, psum_rows = [], []
    for pred_ref in pred_refs:  # static unroll; L is small
        p = jax.nn.sigmoid(pred_ref[...].astype(jnp.float32))
        if needs_mask:
            p = jnp.where(valid, p, 0.0)
        # Sublane-axis reductions only (VPU adds), lane axis stays resident.
        inter_rows.append(jnp.sum(p * g, axis=0, keepdims=True))
        psum_rows.append(jnp.sum(p, axis=0, keepdims=True))

    pieces = inter_rows + psum_rows + [jnp.sum(g, axis=0, keepdims=True)]
    pad = out_rows - len(pieces)
    if pad:
        pieces.append(jnp.zeros((pad, lanes), jnp.float32))
    out_ref[0] = jnp.concatenate(pieces, axis=0)


def _vmem_budgets():
    """(double-buffered input budget, scoped vmem limit), generation-aware."""
    try:
        vmem = pltpu.get_tpu_info().vmem_capacity_bytes
    except Exception:
        vmem = 64 * 1024 * 1024  # conservative (v7x-sized) fallback
    if vmem >= 96 * 1024 * 1024:           # v5e / v6e: 128 MiB VMEM
        return 64 * 1024 * 1024, 100 * 1024 * 1024
    return 32 * 1024 * 1024, 48 * 1024 * 1024   # v7x: 64 MiB physical


def _choose_lanes(total):
    """Lane width for the flat (rows, lanes) view; pad count if unaligned."""
    for lanes in (512, 256, 128):
        if total % lanes == 0:
            return lanes, 0
    return 128, (-total) % 128


def deep_supervision_loss(inputs, gt, *, eps=1e-5):
    """inputs: sequence of [B, C, H, W] logits (any float dtype); gt: [B, C, H, W]."""
    num_levels = len(inputs)
    assert num_levels >= 2, "Deep supervision expects at least 2 heads."
    for x in inputs:
        assert x.shape == gt.shape, "All heads must match the gt shape."
    deep_sup_num = num_levels - 1

    total = math.prod(gt.shape)
    lanes, pad = _choose_lanes(total)

    # Contiguous flattening is free; only the rare unaligned case copies.
    flat_gt = gt.reshape(-1)
    flat_preds = [x.reshape(-1) for x in inputs]
    if pad:
        # sigmoid(-inf) == 0 and gt pad == 0, so padded elements add nothing.
        flat_gt = jnp.pad(flat_gt, (0, pad))
        flat_preds = [jnp.pad(p, (0, pad), constant_values=float("-inf"))
                      for p in flat_preds]
    rows = (total + pad) // lanes
    gt2d = flat_gt.reshape(rows, lanes)
    preds2d = [p.reshape(rows, lanes) for p in flat_preds]

    # Tile rows from the actual itemsize + generation-aware VMEM budget.
    itemsize = max([gt.dtype.itemsize] + [x.dtype.itemsize for x in inputs])
    input_budget, vmem_limit = _vmem_budgets()
    # (L+1) double-buffered input blocks + a few f32 in-kernel temporaries.
    per_row_bytes = (num_levels + 1) * 2 * lanes * itemsize + 4 * lanes * 4
    max_rows = max(8, (input_budget // per_row_bytes) // 8 * 8)

    tr = rows if max_rows >= rows else max_rows
    nt = (rows + tr - 1) // tr
    # Give the "parallel" axis >= 2 steps so both v7x TensorCores get work.
    if nt < 2 and rows > 8:
        tr = ((rows + 1) // 2 + 7) // 8 * 8
        nt = (rows + tr - 1) // tr
    needs_mask = (nt * tr != rows)

    out_rows = ((2 * num_levels + 1 + 7) // 8) * 8

    kernel = functools.partial(
        _ds_partial_kernel, num_levels=num_levels, tile_rows=tr, lanes=lanes,
        total_rows=rows, out_rows=out_rows, needs_mask=needs_mask)

    in_spec = pl.BlockSpec((tr, lanes), lambda i: (i, 0))
    out_spec = pl.BlockSpec((1, out_rows, lanes), lambda i: (i, 0, 0))

    n_elems = rows * lanes
    cost = pl.CostEstimate(
        flops=6 * num_levels * n_elems,
        transcendentals=num_levels * n_elems,
        bytes_accessed=(gt.dtype.itemsize
                        + sum(x.dtype.itemsize for x in inputs)) * n_elems
                       + nt * out_rows * lanes * 4,
    )

    partials = pl.pallas_call(
        kernel,
        out_shape=jax.ShapeDtypeStruct((nt, out_rows, lanes), jnp.float32),
        grid=(nt,),
        in_specs=[in_spec] * (1 + num_levels),   # gt + L prediction heads
        out_specs=out_spec,
        compiler_params=pltpu.CompilerParams(
            dimension_semantics=("parallel",),
            vmem_limit_bytes=vmem_limit,
        ),
        cost_estimate=cost,
    )(gt2d, *preds2d)

    # Tiny cross-tile + cross-lane reduction + finalization in plain JAX.
    # eps and the Dice ratio are applied only after the full per-level
    # reduction, matching the reference.
    L = num_levels
    inter = jnp.sum(partials[:, :L, :], axis=(0, 2))        # (L,)
    psum = jnp.sum(partials[:, L:2 * L, :], axis=(0, 2))    # (L,)
    gsum = jnp.sum(partials[:, 2 * L, :])                   # scalar
    dice = 1.0 - (2.0 * inter + eps) / (psum + gsum + eps)  # (L,)

    weights = jnp.concatenate([
        jnp.array([0.5], jnp.float32),
        jnp.full((deep_sup_num,), 0.5 / deep_sup_num, jnp.float32),
    ])
    return jnp.mean(weights * dice)


def _ref_deep_supervision_loss(inputs, gt, eps=1e-5):
    """Pure-JAX reference mirroring the PyTorch forward."""
    def base_loss(pred, g):
        p = jax.nn.sigmoid(pred.astype(jnp.float32))
        g = g.astype(jnp.float32)
        inter = jnp.sum(p * g)
        denom = jnp.sum(p) + jnp.sum(g)
        return 1.0 - (2.0 * inter + eps) / (denom + eps)

    deep_sup_num = len(inputs) - 1
    weights = [0.5] + [0.5 / deep_sup_num] * deep_sup_num
    losses = [w * base_loss(x, gt) for w, x in zip(weights, inputs)]
    return jnp.mean(jnp.stack(losses))


if __name__ == "__main__":
    key = jax.random.PRNGKey(0)
    B, C, H, W = 2, 4, 16, 16
    num_heads = 4  # main output + 3 deep-supervision heads

    keys = jax.random.split(key, num_heads + 1)
    inputs = [
        jax.random.normal(keys[i], (B, C, H, W), dtype=jnp.float32)
        for i in range(num_heads)
    ]
    gt = (jax.random.uniform(keys[-1], (B, C, H, W)) > 0.5).astype(jnp.float32)

    out = deep_supervision_loss(inputs, gt)
    out = jax.block_until_ready(out)

    ref = _ref_deep_supervision_loss(inputs, gt)
    assert jnp.allclose(out, ref, rtol=1e-5, atol=1e-5), (out, ref)

    print("KERNEL_OK")
</pallas_src>

<mosaic_0001>
module attributes {stable_mosaic.version = 11 : i64} {
  func.func @_ds_partial_kernel(%arg0: i32, %arg1: memref<4x512xf32, #tpu.memory_space<vmem>>, %arg2: memref<4x512xf32, #tpu.memory_space<vmem>>, %arg3: memref<4x512xf32, #tpu.memory_space<vmem>>, %arg4: memref<4x512xf32, #tpu.memory_space<vmem>>, %arg5: memref<4x512xf32, #tpu.memory_space<vmem>>, %arg6: memref<1x16x512xf32, #tpu.memory_space<vmem>>) attributes {dimension_semantics = [#tpu.dimension_semantics<parallel>], iteration_bounds = array<i64: 1>, scalar_prefetch = 0 : i64, scratch_operands = 0 : i64, tpu.core_type = #tpu.core_type<tc>, window_params = [{transform_indices = @transform_0, window_bounds = array<i64: 4, 512>}, {transform_indices = @transform_1, window_bounds = array<i64: 4, 512>}, {transform_indices = @transform_2, window_bounds = array<i64: 4, 512>}, {transform_indices = @transform_3, window_bounds = array<i64: 4, 512>}, {transform_indices = @transform_4, window_bounds = array<i64: 4, 512>}, {transform_indices = @transform_5, window_bounds = array<i64: 1, 16, 512>}]} {
    %c0 = arith.constant 0 : index
    %c0_0 = arith.constant 0 : index
    %0 = vector.load %arg1[%c0, %c0_0] : memref<4x512xf32, #tpu.memory_space<vmem>>, vector<4x512xf32>
    %c0_1 = arith.constant 0 : index
    %c0_2 = arith.constant 0 : index
    %1 = vector.load %arg2[%c0_1, %c0_2] : memref<4x512xf32, #tpu.memory_space<vmem>>, vector<4x512xf32>
    %2 = arith.negf %1 : vector<4x512xf32>
    %3 = math.exp %2 : vector<4x512xf32>
    %cst = arith.constant 1.000000e+00 : f32
    %4 = vector.broadcast %cst : f32 to vector<4x512xf32>
    %5 = arith.addf %4, %3 : vector<4x512xf32>
    %6 = arith.divf %4, %5 : vector<4x512xf32>
    %7 = arith.mulf %6, %0 : vector<4x512xf32>
    %cst_3 = arith.constant dense<0.000000e+00> : vector<512xf32>
    %8 = vector.multi_reduction <add>, %7, %cst_3 [0] : vector<4x512xf32> to vector<512xf32>
    %9 = vector.shape_cast %8 : vector<512xf32> to vector<1x512xf32>
    %cst_4 = arith.constant dense<0.000000e+00> : vector<512xf32>
    %10 = vector.multi_reduction <add>, %6, %cst_4 [0] : vector<4x512xf32> to vector<512xf32>
    %11 = vector.shape_cast %10 : vector<512xf32> to vector<1x512xf32>
    %c0_5 = arith.constant 0 : index
    %c0_6 = arith.constant 0 : index
    %12 = vector.load %arg3[%c0_5, %c0_6] : memref<4x512xf32, #tpu.memory_space<vmem>>, vector<4x512xf32>
    %13 = arith.negf %12 : vector<4x512xf32>
    %14 = math.exp %13 : vector<4x512xf32>
    %cst_7 = arith.constant 1.000000e+00 : f32
    %15 = vector.broadcast %cst_7 : f32 to vector<4x512xf32>
    %16 = arith.addf %15, %14 : vector<4x512xf32>
    %17 = arith.divf %15, %16 : vector<4x512xf32>
    %18 = arith.mulf %17, %0 : vector<4x512xf32>
    %cst_8 = arith.constant dense<0.000000e+00> : vector<512xf32>
    %19 = vector.multi_reduction <add>, %18, %cst_8 [0] : vector<4x512xf32> to vector<512xf32>
    %20 = vector.shape_cast %19 : vector<512xf32> to vector<1x512xf32>
    %cst_9 = arith.constant dense<0.000000e+00> : vector<512xf32>
    %21 = vector.multi_reduction <add>, %17, %cst_9 [0] : vector<4x512xf32> to vector<512xf32>
    %22 = vector.shape_cast %21 : vector<512xf32> to vector<1x512xf32>
    %c0_10 = arith.constant 0 : index
    %c0_11 = arith.constant 0 : index
    %23 = vector.load %arg4[%c0_10, %c0_11] : memref<4x512xf32, #tpu.memory_space<vmem>>, vector<4x512xf32>
    %24 = arith.negf %23 : vector<4x512xf32>
    %25 = math.exp %24 : vector<4x512xf32>
    %cst_12 = arith.constant 1.000000e+00 : f32
    %26 = vector.broadcast %cst_12 : f32 to vector<4x512xf32>
    %27 = arith.addf %26, %25 : vector<4x512xf32>
    %28 = arith.divf %26, %27 : vector<4x512xf32>
    %29 = arith.mulf %28, %0 : vector<4x512xf32>
    %cst_13 = arith.constant dense<0.000000e+00> : vector<512xf32>
    %30 = vector.multi_reduction <add>, %29, %cst_13 [0] : vector<4x512xf32> to vector<512xf32>
    %31 = vector.shape_cast %30 : vector<512xf32> to vector<1x512xf32>
    %cst_14 = arith.constant dense<0.000000e+00> : vector<512xf32>
    %32 = vector.multi_reduction <add>, %28, %cst_14 [0] : vector<4x512xf32> to vector<512xf32>
    %33 = vector.shape_cast %32 : vector<512xf32> to vector<1x512xf32>
    %c0_15 = arith.constant 0 : index
    %c0_16 = arith.constant 0 : index
    %34 = vector.load %arg5[%c0_15, %c0_16] : memref<4x512xf32, #tpu.memory_space<vmem>>, vector<4x512xf32>
    %35 = arith.negf %34 : vector<4x512xf32>
    %36 = math.exp %35 : vector<4x512xf32>
    %cst_17 = arith.constant 1.000000e+00 : f32
    %37 = vector.broadcast %cst_17 : f32 to vector<4x512xf32>
    %38 = arith.addf %37, %36 : vector<4x512xf32>
    %39 = arith.divf %37, %38 : vector<4x512xf32>
    %40 = arith.mulf %39, %0 : vector<4x512xf32>
    %cst_18 = arith.constant dense<0.000000e+00> : vector<512xf32>
    %41 = vector.multi_reduction <add>, %40, %cst_18 [0] : vector<4x512xf32> to vector<512xf32>
    %42 = vector.shape_cast %41 : vector<512xf32> to vector<1x512xf32>
    %cst_19 = arith.constant dense<0.000000e+00> : vector<512xf32>
    %43 = vector.multi_reduction <add>, %39, %cst_19 [0] : vector<4x512xf32> to vector<512xf32>
    %44 = vector.shape_cast %43 : vector<512xf32> to vector<1x512xf32>
    %cst_20 = arith.constant dense<0.000000e+00> : vector<512xf32>
    %45 = vector.multi_reduction <add>, %0, %cst_20 [0] : vector<4x512xf32> to vector<512xf32>
    %46 = vector.shape_cast %45 : vector<512xf32> to vector<1x512xf32>
    %cst_21 = arith.constant 0.000000e+00 : f32
    %47 = vector.broadcast %cst_21 : f32 to vector<7x512xf32>
    %48 = tpu.concatenate %9, %20, %31, %42, %11, %22, %33, %44, %46, %47 in 0 : vector<1x512xf32>, vector<1x512xf32>, vector<1x512xf32>, vector<1x512xf32>, vector<1x512xf32>, vector<1x512xf32>, vector<1x512xf32>, vector<1x512xf32>, vector<1x512xf32>, vector<7x512xf32> -> vector<16x512xf32>
    %c0_22 = arith.constant 0 : index
    %c0_23 = arith.constant 0 : index
    %c0_24 = arith.constant 0 : index
    %49 = vector.load %arg6[%c0_22, %c0_23, %c0_24] : memref<1x16x512xf32, #tpu.memory_space<vmem>>, vector<1x16x512xf32>
    %50 = vector.shape_cast %49 : vector<1x16x512xf32> to vector<16x512xf32>
    %51 = vector.shape_cast %48 : vector<16x512xf32> to vector<1x16x512xf32>
    tpu.vector_store %arg6[%c0_22, %c0_23, %c0_24], %51 {strides = array<i32>} : memref<1x16x512xf32, #tpu.memory_space<vmem>>, vector<1x16x512xf32>,
    return
  }
  func.func @transform_0(%arg0: i32) -> (i32, i32) {
    %c0_i32 = arith.constant 0 : i32
    %c0_i32_0 = arith.constant 0 : i32
    return %arg0, %c0_i32 : i32, i32
  }
  func.func @transform_1(%arg0: i32) -> (i32, i32) {
    %c0_i32 = arith.constant 0 : i32
    %c0_i32_0 = arith.constant 0 : i32
    return %arg0, %c0_i32 : i32, i32
  }
  func.func @transform_2(%arg0: i32) -> (i32, i32) {
    %c0_i32 = arith.constant 0 : i32
    %c0_i32_0 = arith.constant 0 : i32
    return %arg0, %c0_i32 : i32, i32
  }
  func.func @transform_3(%arg0: i32) -> (i32, i32) {
    %c0_i32 = arith.constant 0 : i32
    %c0_i32_0 = arith.constant 0 : i32
    return %arg0, %c0_i32 : i32, i32
  }
  func.func @transform_4(%arg0: i32) -> (i32, i32) {
    %c0_i32 = arith.constant 0 : i32
    %c0_i32_0 = arith.constant 0 : i32
    return %arg0, %c0_i32 : i32, i32
  }
  func.func @transform_5(%arg0: i32) -> (i32, i32, i32) {
    %c0_i32 = arith.constant 0 : i32
    %c0_i32_0 = arith.constant 0 : i32
    %c0_i32_1 = arith.constant 0 : i32
    return %arg0, %c0_i32, %c0_i32_0 : i32, i32, i32
  }
}

</mosaic_0001>

<llo_original>
// kernel: tpu_custom_call.1
$region0: #{tpu_custom_call.1}
  #allocation0 [shape = 'u32[]', space=smem, size = 0x4, offset = 0x4, fixed_abs, tag = 'smem constant byte address 0x4 - core index']
  #allocation1 [shape = 'u32[144,128]{1,0:T(1,128)}', space=vmem, size = 0x12000, scoped, tag = 'internal scratch']
  %s0 = inlined_call_operand.hbm [shape: f32[4,512], index: 0, kind: input, shape index: {}]
  %s1 = inlined_call_operand.hbm [shape: f32[4,512], index: 1, kind: input, shape index: {}]
  %s2 = inlined_call_operand.hbm [shape: f32[4,512], index: 2, kind: input, shape index: {}]
  %s3 = inlined_call_operand.hbm [shape: f32[4,512], index: 3, kind: input, shape index: {}]
  %s4 = inlined_call_operand.hbm [shape: f32[4,512], index: 4, kind: input, shape index: {}]
  %s5 = inlined_call_operand.hbm [shape: f32[1,16,512], index: 5, kind: output, shape index: {}]
  %s6 = sld [smem:[#allocation0]]
  $region50: #{tpu_custom_call.1} parent=0
    _
  %s8 = ssub.s32 1, %s6
  %s9 = scalar_select 0, %s8, %s6
  $region1: #{tpu_custom_call.1} parent=0
    #allocation2 [shape = 'u8[8192]{0}', space=vmem, size = 0x2000, scoped, tag = 'input window, operand 0, single buffered']
    #allocation3 [shape = 's32[1]{0}', space=sflag, size = 0x4, scoped, tag = 'scoped memory for tpu_custom_call.1']
    #allocation4 [shape = 's32[1]{0}', space=sflag, size = 0x4, scoped, tag = 'scoped memory for tpu_custom_call.1']
    #allocation5 [shape = 'u8[8192]{0}', space=vmem, size = 0x2000, scoped, tag = 'input window, operand 1, single buffered']
    #allocation6 [shape = 's32[1]{0}', space=sflag, size = 0x4, scoped, tag = 'scoped memory for tpu_custom_call.1']
    #allocation7 [shape = 'u8[8192]{0}', space=vmem, size = 0x2000, scoped, tag = 'input window, operand 2, single buffered']
    #allocation8 [shape = 'u8[8192]{0}', space=vmem, size = 0x2000, scoped, tag = 'input window, operand 3, single buffered']
    #allocation9 [shape = 's32[1]{0}', space=sflag, size = 0x4, scoped, tag = 'scoped memory for tpu_custom_call.1']
    #allocation10 [shape = 'u8[8192]{0}', space=vmem, size = 0x2000, scoped, tag = 'input window, operand 4, single buffered']
    #allocation11 [shape = 'u8[32768]{0}', space=vmem, size = 0x8000, scoped, tag = 'output window, operand 0, single buffered']
    %10 = vsyncpa [#allocation3], 0
    %11 = vsyncpa [#allocation6], 0
    %12 = vsyncpa [#allocation9], 0
    %13 = vsyncpa [#allocation4], 0
    // Predicated region
    $region2: #{tpu_custom_call.1} parent=1 // pred_check
      _
    $region3: #{tpu_custom_call.1} parent=1 // pred_check_branch
      %15 = sbr.rel (0) target = $region5
    $region4: #{tpu_custom_call.1} parent=1 // pred_region
      %s17 = ssub.s32 256, 256
      %18 = vsyncadd [#allocation3], %s17
      %s20 = sshll.u32 [#allocation2], 4
      %s21 = int_to_ptr.vmem [resolvable:$true] %s20
      %23 = dma.hbm_to_vmem [thread:$0]  %s0, 256, %s21, [#allocation3]
    $region5: #{tpu_custom_call.1} parent=1 // pred_fallthru
      _
    // Predicated region
    $region6: #{tpu_custom_call.1} parent=1 // pred_check
      _
    $region7: #{tpu_custom_call.1} parent=1 // pred_check_branch
      %25 = sbr.rel (0) target = $region9
    $region8: #{tpu_custom_call.1} parent=1 // pred_region
      %s27 = ssub.s32 256, 256
      %28 = vsyncadd [#allocation6], %s27
      %s30 = sshll.u32 [#allocation5], 4
      %s31 = int_to_ptr.vmem [resolvable:$true] %s30
      %33 = dma.hbm_to_vmem [thread:$0]  %s1, 256, %s31, [#allocation6]
    $region9: #{tpu_custom_call.1} parent=1 // pred_fallthru
      _
    // Predicated region
    $region10: #{tpu_custom_call.1} parent=1 // pred_check
      _
    $region11: #{tpu_custom_call.1} parent=1 // pred_check_branch
      %35 = sbr.rel (0) target = $region13
    $region12: #{tpu_custom_call.1} parent=1 // pred_region
      %s37 = ssub.s32 256, 256
      %38 = vsyncadd [#allocation6], %s37
      %s40 = sshll.u32 [#allocation7], 4
      %s41 = int_to_ptr.vmem [resolvable:$true] %s40
      %43 = dma.hbm_to_vmem [thread:$0]  %s2, 256, %s41, [#allocation6]
    $region13: #{tpu_custom_call.1} parent=1 // pred_fallthru
      _
    // Predicated region
    $region14: #{tpu_custom_call.1} parent=1 // pred_check
      _
    $region15: #{tpu_custom_call.1} parent=1 // pred_check_branch
      %45 = sbr.rel (0) target = $region17
    $region16: #{tpu_custom_call.1} parent=1 // pred_region
      %s47 = ssub.s32 256, 256
      %48 = vsyncadd [#allocation9], %s47
      %s50 = sshll.u32 [#allocation8], 4
      %s51 = int_to_ptr.vmem [resolvable:$true] %s50
      %53 = dma.hbm_to_vmem [thread:$0]  %s3, 256, %s51, [#allocation9]
    $region17: #{tpu_custom_call.1} parent=1 // pred_fallthru
      _
    // Predicated region
    $region18: #{tpu_custom_call.1} parent=1 // pred_check
      _
    $region19: #{tpu_custom_call.1} parent=1 // pred_check_branch
      %55 = sbr.rel (0) target = $region21
    $region20: #{tpu_custom_call.1} parent=1 // pred_region
      %s57 = ssub.s32 256, 256
      %58 = vsyncadd [#allocation9], %s57
      %s60 = sshll.u32 [#allocation10], 4
      %s61 = int_to_ptr.vmem [resolvable:$true] %s60
      %63 = dma.hbm_to_vmem [thread:$0]  %s4, 256, %s61, [#allocation9]
    $region21: #{tpu_custom_call.1} parent=1 // pred_fallthru
      _
    // Predicated region
    $region22: #{tpu_custom_call.1} parent=1 // pred_check
      _
    $region23: #{tpu_custom_call.1} parent=1 // pred_check_branch
      %65 = sbr.rel (0) target = $region25
    $region24: #{tpu_custom_call.1} parent=1 // pred_region
      %66 = dma.done [#allocation3], 256
    $region25: #{tpu_custom_call.1} parent=1 // pred_fallthru
      _
    // Predicated region
    $region26: #{tpu_custom_call.1} parent=1 // pred_check
      _
    $region27: #{tpu_custom_call.1} parent=1 // pred_check_branch
      %68 = sbr.rel (0) target = $region29
    $region28: #{tpu_custom_call.1} parent=1 // pred_region
      %69 = dma.done [#allocation6], 256
    $region29: #{tpu_custom_call.1} parent=1 // pred_fallthru
      _
    // Predicated region
    $region30: #{tpu_custom_call.1} parent=1 // pred_check
      _
    $region31: #{tpu_custom_call.1} parent=1 // pred_check_branch
      %71 = sbr.rel (0) target = $region33
    $region32: #{tpu_custom_call.1} parent=1 // pred_region
      %72 = dma.done [#allocation6], 256
    $region33: #{tpu_custom_call.1} parent=1 // pred_fallthru
      _
    // Predicated region
    $region34: #{tpu_custom_call.1} parent=1 // pred_check
      _
    $region35: #{tpu_custom_call.1} parent=1 // pred_check_branch
      %74 = sbr.rel (0) target = $region37
    $region36: #{tpu_custom_call.1} parent=1 // pred_region
      %75 = dma.done [#allocation9], 256
    $region37: #{tpu_custom_call.1} parent=1 // pred_fallthru
      _
    // Predicated region
    $region38: #{tpu_custom_call.1} parent=1 // pred_check
      _
    $region39: #{tpu_custom_call.1} parent=1 // pred_check_branch
      %77 = sbr.rel (0) target = $region41
    $region40: #{tpu_custom_call.1} parent=1 // pred_region
      %78 = dma.done [#allocation9], 256
    $region41: #{tpu_custom_call.1} parent=1 // pred_fallthru
      _
    %v79 = vld [vmem:[#allocation2] sm:$0xff]
    %v80 = vld [vmem:[#allocation2 + $0x8] sm:$0xff]
    %v81 = vld [vmem:[#allocation5] sm:$0xff]
    %v82 = vld [vmem:[#allocation5 + $0x8] sm:$0xff]
    %v83 = vxor.u32 %v81, 2147483648
    %v84 = vxor.u32 %v82, 2147483648
    %v85 = vmul.f32 %v83, 1.442695
    %v86 = vpow.pop %v85
    %v87 = vmul.f32 %v84, 1.442695
    %v88 = vpow.pop %v87
    %v89 = vadd.f32 %v86, 1.0
    %v90 = vadd.f32 %v88, 1.0
    %v91 = vrcp.pop %v89
    %v92 = vmul.f32 1.0, %v91
    %v93 = vrcp.pop %v90
    %v94 = vmul.f32 1.0, %v93
    %v95 = vmul.f32 %v92, %v79
    %v96 = vmul.f32 %v94, %v80
    %v99 = vcombine.high %v95, %v95
    %v100 = vcombine.high %v96, %v96
    %vm103 = vcmask 1043456
    %v104 = vsel %vm103, %v95, 0.0
    %v105 = vrot.slane %v104, 4
    %v106 = vadd.f32 %v104, %v105
    %v107 = vrot.slane %v106, 2
    %v108 = vadd.f32 %v106, %v107
    %v109 = vrot.slane %v108, 1
    %v110 = vadd.f32 %v108, %v109
    %v111 = vsel %vm103, %v99, 0.0
    %v112 = vrot.slane %v111, 4
    %v113 = vadd.f32 %v111, %v112
    %v114 = vrot.slane %v113, 2
    %v115 = vadd.f32 %v113, %v114
    %v116 = vrot.slane %v115, 1
    %v117 = vadd.f32 %v115, %v116
    %v118 = vsel %vm103, %v96, 0.0
    %v119 = vrot.slane %v118, 4
    %v120 = vadd.f32 %v118, %v119
    %v121 = vrot.slane %v120, 2
    %v122 = vadd.f32 %v120, %v121
    %v123 = vrot.slane %v122, 1
    %v124 = vadd.f32 %v122, %v123
    %v125 = vsel %vm103, %v100, 0.0
    %v126 = vrot.slane %v125, 4
    %v127 = vadd.f32 %v125, %v126
    %v128 = vrot.slane %v127, 2
    %v129 = vadd.f32 %v127, %v128
    %v130 = vrot.slane %v129, 1
    %v131 = vadd.f32 %v129, %v130
    %v134 = vcombine.high %v92, %v92
    %v135 = vcombine.high %v94, %v94
    %v138 = vsel %vm103, %v92, 0.0
    %v139 = vrot.slane %v138, 4
    %v140 = vadd.f32 %v138, %v139
    %v141 = vrot.slane %v140, 2
    %v142 = vadd.f32 %v140, %v141
    %v143 = vrot.slane %v142, 1
    %v144 = vadd.f32 %v142, %v143
    %v145 = vsel %vm103, %v134, 0.0
    %v146 = vrot.slane %v145, 4
    %v147 = vadd.f32 %v145, %v146
    %v148 = vrot.slane %v147, 2
    %v149 = vadd.f32 %v147, %v148
    %v150 = vrot.slane %v149, 1
    %v151 = vadd.f32 %v149, %v150
    %v152 = vsel %vm103, %v94, 0.0
    %v153 = vrot.slane %v152, 4
    %v154 = vadd.f32 %v152, %v153
    %v155 = vrot.slane %v154, 2
    %v156 = vadd.f32 %v154, %v155
    %v157 = vrot.slane %v156, 1
    %v158 = vadd.f32 %v156, %v157
    %v159 = vsel %vm103, %v135, 0.0
    %v160 = vrot.slane %v159, 4
    %v161 = vadd.f32 %v159, %v160
    %v162 = vrot.slane %v161, 2
    %v163 = vadd.f32 %v161, %v162
    %v164 = vrot.slane %v163, 1
    %v165 = vadd.f32 %v163, %v164
    %v166 = vld [vmem:[#allocation7] sm:$0xff]
    %v167 = vld [vmem:[#allocation7 + $0x8] sm:$0xff]
    %v168 = vxor.u32 %v166, 2147483648
    %v169 = vxor.u32 %v167, 2147483648
    %v170 = vmul.f32 %v168, 1.442695
    %v171 = vpow.pop %v170
    %v172 = vmul.f32 %v169, 1.442695
    %v173 = vpow.pop %v172
    %v174 = vadd.f32 %v171, 1.0
    %v175 = vadd.f32 %v173, 1.0
    %v176 = vrcp.pop %v174
    %v177 = vmul.f32 1.0, %v176
    %v178 = vrcp.pop %v175
    %v179 = vmul.f32 1.0, %v178
    %v180 = vmul.f32 %v177, %v79
    %v181 = vmul.f32 %v179, %v80
    %v184 = vcombine.high %v180, %v180
    %v185 = vcombine.high %v181, %v181
    %v188 = vsel %vm103, %v180, 0.0
    %v189 = vrot.slane %v188, 4
    %v190 = vadd.f32 %v188, %v189
    %v191 = vrot.slane %v190, 2
    %v192 = vadd.f32 %v190, %v191
    %v193 = vrot.slane %v192, 1
    %v194 = vadd.f32 %v192, %v193
    %v195 = vsel %vm103, %v184, 0.0
    %v196 = vrot.slane %v195, 4
    %v197 = vadd.f32 %v195, %v196
    %v198 = vrot.slane %v197, 2
    %v199 = vadd.f32 %v197, %v198
    %v200 = vrot.slane %v199, 1
    %v201 = vadd.f32 %v199, %v200
    %v202 = vsel %vm103, %v181, 0.0
    %v203 = vrot.slane %v202, 4
    %v204 = vadd.f32 %v202, %v203
    %v205 = vrot.slane %v204, 2
    %v206 = vadd.f32 %v204, %v205
    %v207 = vrot.slane %v206, 1
    %v208 = vadd.f32 %v206, %v207
    %v209 = vsel %vm103, %v185, 0.0
    %v210 = vrot.slane %v209, 4
    %v211 = vadd.f32 %v209, %v210
    %v212 = vrot.slane %v211, 2
    %v213 = vadd.f32 %v211, %v212
    %v214 = vrot.slane %v213, 1
    %v215 = vadd.f32 %v213, %v214
    %v218 = vcombine.high %v177, %v177
    %v219 = vcombine.high %v179, %v179
    %v222 = vsel %vm103, %v177, 0.0
    %v223 = vrot.slane %v222, 4
    %v224 = vadd.f32 %v222, %v223
    %v225 = vrot.slane %v224, 2
    %v226 = vadd.f32 %v224, %v225
    %v227 = vrot.slane %v226, 1
    %v228 = vadd.f32 %v226, %v227
    %v229 = vsel %vm103, %v218, 0.0
    %v230 = vrot.slane %v229, 4
    %v231 = vadd.f32 %v229, %v230
    %v232 = vrot.slane %v231, 2
    %v233 = vadd.f32 %v231, %v232
    %v234 = vrot.slane %v233, 1
    %v235 = vadd.f32 %v233, %v234
    %v236 = vsel %vm103, %v179, 0.0
    %v237 = vrot.slane %v236, 4
    %v238 = vadd.f32 %v236, %v237
    %v239 = vrot.slane %v238, 2
    %v240 = vadd.f32 %v238, %v239
    %v241 = vrot.slane %v240, 1
    %v242 = vadd.f32 %v240, %v241
    %v243 = vsel %vm103, %v219, 0.0
    %v244 = vrot.slane %v243, 4
    %v245 = vadd.f32 %v243, %v244
    %v246 = vrot.slane %v245, 2
    %v247 = vadd.f32 %v245, %v246
    %v248 = vrot.slane %v247, 1
    %v249 = vadd.f32 %v247, %v248
    %v250 = vld [vmem:[#allocation8] sm:$0xff]
    %v251 = vld [vmem:[#allocation8 + $0x8] sm:$0xff]
    %v252 = vxor.u32 %v250, 2147483648
    %v253 = vxor.u32 %v251, 2147483648
    %v254 = vmul.f32 %v252, 1.442695
    %v255 = vpow.pop %v254
    %v256 = vmul.f32 %v253, 1.442695
    %v257 = vpow.pop %v256
    %v258 = vadd.f32 %v255, 1.0
    %v259 = vadd.f32 %v257, 1.0
    %v260 = vrcp.pop %v258
    %v261 = vmul.f32 1.0, %v260
    %v262 = vrcp.pop %v259
    %v263 = vmul.f32 1.0, %v262
    %v264 = vmul.f32 %v261, %v79
    %v265 = vmul.f32 %v263, %v80
    %v268 = vcombine.high %v264, %v264
    %v269 = vcombine.high %v265, %v265
    %v272 = vsel %vm103, %v264, 0.0
    %v273 = vrot.slane %v272, 4
    %v274 = vadd.f32 %v272, %v273
    %v275 = vrot.slane %v274, 2
    %v276 = vadd.f32 %v274, %v275
    %v277 = vrot.slane %v276, 1
    %v278 = vadd.f32 %v276, %v277
    %v279 = vsel %vm103, %v268, 0.0
    %v280 = vrot.slane %v279, 4
    %v281 = vadd.f32 %v279, %v280
    %v282 = vrot.slane %v281, 2
    %v283 = vadd.f32 %v281, %v282
    %v284 = vrot.slane %v283, 1
    %v285 = vadd.f32 %v283, %v284
    %v286 = vsel %vm103, %v265, 0.0
    %v287 = vrot.slane %v286, 4
    %v288 = vadd.f32 %v286, %v287
    %v289 = vrot.slane %v288, 2
    %v290 = vadd.f32 %v288, %v289
    %v291 = vrot.slane %v290, 1
    %v292 = vadd.f32 %v290, %v291
    %v293 = vsel %vm103, %v269, 0.0
    %v294 = vrot.slane %v293, 4
    %v295 = vadd.f32 %v293, %v294
    %v296 = vrot.slane %v295, 2
    %v297 = vadd.f32 %v295, %v296
    %v298 = vrot.slane %v297, 1
    %v299 = vadd.f32 %v297, %v298
    %v302 = vcombine.high %v261, %v261
    %v303 = vcombine.high %v263, %v263
    %v306 = vsel %vm103, %v261, 0.0
    %v307 = vrot.slane %v306, 4
    %v308 = vadd.f32 %v306, %v307
    %v309 = vrot.slane %v308, 2
    %v310 = vadd.f32 %v308, %v309
    %v311 = vrot.slane %v310, 1
    %v312 = vadd.f32 %v310, %v311
    %v313 = vsel %vm103, %v302, 0.0
    %v314 = vrot.slane %v313, 4
    %v315 = vadd.f32 %v313, %v314
    %v316 = vrot.slane %v315, 2
    %v317 = vadd.f32 %v315, %v316
    %v318 = vrot.slane %v317, 1
    %v319 = vadd.f32 %v317, %v318
    %v320 = vsel %vm103, %v263, 0.0
    %v321 = vrot.slane %v320, 4
    %v322 = vadd.f32 %v320, %v321
    %v323 = vrot.slane %v322, 2
    %v324 = vadd.f32 %v322, %v323
    %v325 = vrot.slane %v324, 1
    %v326 = vadd.f32 %v324, %v325
    %v327 = vsel %vm103, %v303, 0.0
    %v328 = vrot.slane %v327, 4
    %v329 = vadd.f32 %v327, %v328
    %v330 = vrot.slane %v329, 2
    %v331 = vadd.f32 %v329, %v330
    %v332 = vrot.slane %v331, 1
    %v333 = vadd.f32 %v331, %v332
    %v334 = vld [vmem:[#allocation10] sm:$0xff]
    %v335 = vld [vmem:[#allocation10 + $0x8] sm:$0xff]
    %v336 = vxor.u32 %v334, 2147483648
    %v337 = vxor.u32 %v335, 2147483648
    %v338 = vmul.f32 %v336, 1.442695
    %v339 = vpow.pop %v338
    %v340 = vmul.f32 %v337, 1.442695
    %v341 = vpow.pop %v340
    %v342 = vadd.f32 %v339, 1.0
    %v343 = vadd.f32 %v341, 1.0
    %v344 = vrcp.pop %v342
    %v345 = vmul.f32 1.0, %v344
    %v346 = vrcp.pop %v343
    %v347 = vmul.f32 1.0, %v346
    %v348 = vmul.f32 %v345, %v79
    %v349 = vmul.f32 %v347, %v80
    %v352 = vcombine.high %v348, %v348
    %v353 = vcombine.high %v349, %v349
    %v356 = vsel %vm103, %v348, 0.0
    %v357 = vrot.slane %v356, 4
    %v358 = vadd.f32 %v356, %v357
    %v359 = vrot.slane %v358, 2
    %v360 = vadd.f32 %v358, %v359
    %v361 = vrot.slane %v360, 1
    %v362 = vadd.f32 %v360, %v361
    %v363 = vsel %vm103, %v352, 0.0
    %v364 = vrot.slane %v363, 4
    %v365 = vadd.f32 %v363, %v364
    %v366 = vrot.slane %v365, 2
    %v367 = vadd.f32 %v365, %v366
    %v368 = vrot.slane %v367, 1
    %v369 = vadd.f32 %v367, %v368
    %v370 = vsel %vm103, %v349, 0.0
    %v371 = vrot.slane %v370, 4
    %v372 = vadd.f32 %v370, %v371
    %v373 = vrot.slane %v372, 2
    %v374 = vadd.f32 %v372, %v373
    %v375 = vrot.slane %v374, 1
    %v376 = vadd.f32 %v374, %v375
    %v377 = vsel %vm103, %v353, 0.0
    %v378 = vrot.slane %v377, 4
    %v379 = vadd.f32 %v377, %v378
    %v380 = vrot.slane %v379, 2
    %v381 = vadd.f32 %v379, %v380
    %v382 = vrot.slane %v381, 1
    %v383 = vadd.f32 %v381, %v382
    %v386 = vcombine.high %v345, %v345
    %v387 = vcombine.high %v347, %v347
    %v390 = vsel %vm103, %v345, 0.0
    %v391 = vrot.slane %v390, 4
    %v392 = vadd.f32 %v390, %v391
    %v393 = vrot.slane %v392, 2
    %v394 = vadd.f32 %v392, %v393
    %v395 = vrot.slane %v394, 1
    %v396 = vadd.f32 %v394, %v395
    %v397 = vsel %vm103, %v386, 0.0
    %v398 = vrot.slane %v397, 4
    %v399 = vadd.f32 %v397, %v398
    %v400 = vrot.slane %v399, 2
    %v401 = vadd.f32 %v399, %v400
    %v402 = vrot.slane %v401, 1
    %v403 = vadd.f32 %v401, %v402
    %v404 = vsel %vm103, %v347, 0.0
    %v405 = vrot.slane %v404, 4
    %v406 = vadd.f32 %v404, %v405
    %v407 = vrot.slane %v406, 2
    %v408 = vadd.f32 %v406, %v407
    %v409 = vrot.slane %v408, 1
    %v410 = vadd.f32 %v408, %v409
    %v411 = vsel %vm103, %v387, 0.0
    %v412 = vrot.slane %v411, 4
    %v413 = vadd.f32 %v411, %v412
    %v414 = vrot.slane %v413, 2
    %v415 = vadd.f32 %v413, %v414
    %v416 = vrot.slane %v415, 1
    %v417 = vadd.f32 %v415, %v416
    %v420 = vcombine.high %v79, %v79
    %v421 = vcombine.high %v80, %v80
    %v424 = vsel %vm103, %v79, 0.0
    %v425 = vrot.slane %v424, 4
    %v426 = vadd.f32 %v424, %v425
    %v427 = vrot.slane %v426, 2
    %v428 = vadd.f32 %v426, %v427
    %v429 = vrot.slane %v428, 1
    %v430 = vadd.f32 %v428, %v429
    %v431 = vsel %vm103, %v420, 0.0
    %v432 = vrot.slane %v431, 4
    %v433 = vadd.f32 %v431, %v432
    %v434 = vrot.slane %v433, 2
    %v435 = vadd.f32 %v433, %v434
    %v436 = vrot.slane %v435, 1
    %v437 = vadd.f32 %v435, %v436
    %v438 = vsel %vm103, %v80, 0.0
    %v439 = vrot.slane %v438, 4
    %v440 = vadd.f32 %v438, %v439
    %v441 = vrot.slane %v440, 2
    %v442 = vadd.f32 %v440, %v441
    %v443 = vrot.slane %v442, 1
    %v444 = vadd.f32 %v442, %v443
    %v445 = vsel %vm103, %v421, 0.0
    %v446 = vrot.slane %v445, 4
    %v447 = vadd.f32 %v445, %v446
    %v448 = vrot.slane %v447, 2
    %v449 = vadd.f32 %v447, %v448
    %v450 = vrot.slane %v449, 1
    %v451 = vadd.f32 %v449, %v450
    %vm452 = vcmask 1040384
    %v453 = vsel %vm452, %v110, %v194
    %v454 = vsel %vm452, %v117, %v201
    %v455 = vsel %vm452, %v124, %v208
    %v456 = vsel %vm452, %v131, %v215
    %vm457 = vcmask 1041408
    %v458 = vsel %vm457, %v453, %v278
    %v459 = vsel %vm457, %v454, %v285
    %v460 = vsel %vm457, %v455, %v292
    %v461 = vsel %vm457, %v456, %v299
    %vm462 = vcmask 1042432
    %v463 = vsel %vm462, %v458, %v362
    %v464 = vsel %vm462, %v459, %v369
    %v465 = vsel %vm462, %v460, %v376
    %v466 = vsel %vm462, %v461, %v383
    %v467 = vsel %vm103, %v463, %v144
    %v468 = vsel %vm103, %v464, %v151
    %v469 = vsel %vm103, %v465, %v158
    %v470 = vsel %vm103, %v466, %v165
    %vm471 = vcmask 1044480
    %v472 = vsel %vm471, %v467, %v228
    %v473 = vsel %vm471, %v468, %v235
    %v474 = vsel %vm471, %v469, %v242
    %v475 = vsel %vm471, %v470, %v249
    %vm476 = vcmask 1045504
    %v477 = vsel %vm476, %v472, %v312
    %v478 = vsel %vm476, %v473, %v319
    %v479 = vsel %vm476, %v474, %v326
    %v480 = vsel %vm476, %v475, %v333
    %vm481 = vcmask 1046528
    %v482 = vsel %vm481, %v477, %v396
    %v483 = vsel %vm481, %v478, %v403
    %v484 = vsel %vm481, %v479, %v410
    %v485 = vsel %vm481, %v480, %v417
    %v486 = vsel %vm452, %v430, 0.0
    %v487 = vsel %vm452, %v437, 0.0
    %v488 = vsel %vm452, %v444, 0.0
    %v489 = vsel %vm452, %v451, 0.0
    %490 = vst [vmem:[#allocation11] sm:$0xff] %v482
    %491 = vst [vmem:[#allocation11 + $0x8] sm:$0xff] %v483
    %492 = vst [vmem:[#allocation11 + $0x10] sm:$0xff] %v484
    %493 = vst [vmem:[#allocation11 + $0x18] sm:$0xff] %v485
    %494 = vst [vmem:[#allocation11 + $0x20] sm:$0xff] %v486
    %495 = vst [vmem:[#allocation11 + $0x28] sm:$0xff] %v487
    %496 = vst [vmem:[#allocation11 + $0x30] sm:$0xff] %v488
    %497 = vst [vmem:[#allocation11 + $0x38] sm:$0xff] %v489
    // Predicated region
    $region42: #{tpu_custom_call.1} parent=1 // pred_check
      _
    $region43: #{tpu_custom_call.1} parent=1 // pred_check_branch
      %499 = sbr.rel (0) target = $region45
    $region44: #{tpu_custom_call.1} parent=1 // pred_region
      %s501 = ssub.s32 1024, 1024
      %502 = vsyncadd [#allocation4], %s501
      %s503 = sshll.u32 [#allocation11], 4
      %s504 = int_to_ptr.vmem [resolvable:$true] %s503
      %509 = dma.vmem_to_hbm [thread:$0]  %s504, 1024, %s5, [#allocation4], 512, 512, 32
    $region45: #{tpu_custom_call.1} parent=1 // pred_fallthru
      _
    // Predicated region
    $region46: #{tpu_custom_call.1} parent=1 // pred_check
      _
    $region47: #{tpu_custom_call.1} parent=1 // pred_check_branch
      %511 = sbr.rel (0) target = $region49
    $region48: #{tpu_custom_call.1} parent=1 // pred_region
      %512 = dma.done [#allocation4], 1024
    $region49: #{tpu_custom_call.1} parent=1 // pred_fallthru
      _
    %513 = vsyncpa [#allocation3], 1
    %514 = vsyncpa [#allocation6], 1
    %515 = vsyncpa [#allocation9], 1
    %516 = vsyncpa [#allocation4], 1

</llo_original>
